<compile_context>
chip_gen: v6e
topology: v6e:2x2x1
jax: 0.10.0
libtpu: 0.0.40
codegen_flags: <defaults>
</compile_context>

<pallas_src>
import jax
import jax.numpy as jnp
from jax.experimental import pallas as pl
from jax.experimental.pallas import tpu as pltpu

OBS_DIM = 22
ACT_DIM = 4
IN_DIM = OBS_DIM + ACT_DIM      # 26
IN_PAD = 32                     # zero-padded feature dim (clean sublane multiple)
HIDDEN = 32                     # args.hiddenSize (synthetic choice)
TB_MAX = 8192                   # batch tile = MXU lane (N) extent per grid step
LANE = 128


def _round_up(n, m):
    return ((n + m - 1) // m) * m


def soft_q_kernel(xt_ref, w1_ref, w2_ref, p_ref, q_ref):
    # xt_ref: (IN_PAD, TB) bf16   -- x transposed, features on sublanes, batch on lanes
    # w1_ref: (HIDDEN, IN_PAD) bf16, w2_ref: (HIDDEN, HIDDEN) bf16  (PyTorch orientation)
    # p_ref : (HIDDEN, 4) f32 columns: 0=b1, 1=b2, 2=wq, 3=[bq, 0, ...]
    # q_ref : (1, TB) f32
    # fc1 + ReLU: (32x32)@(32xTB) -> batch fills the MXU lanes; f32 accumulation.
    h1 = jnp.dot(w1_ref[...], xt_ref[...], preferred_element_type=jnp.float32)
    h1 = jnp.maximum(h1 + p_ref[:, 0:1], 0.0)
    # fc2 + ReLU
    h2 = jnp.dot(w2_ref[...], h1.astype(jnp.bfloat16),
                 preferred_element_type=jnp.float32)
    h2 = jnp.maximum(h2 + p_ref[:, 1:2], 0.0)
    # fc_q: VPU multiply + cross-sublane reduce (keeps the MXU free of an N=1 matmul).
    q = jnp.sum(h2 * p_ref[:, 2:3], axis=0, keepdims=True) + p_ref[0:1, 3:4]
    q_ref[...] = q.astype(q_ref.dtype)


def _choose_tile(batch, tb_max):
    b_ceil = _round_up(batch, LANE)
    if b_ceil <= tb_max:
        return b_ceil
    # Even number of grid steps so v7x's two TensorCores get balanced work.
    n_steps = _round_up(pl.cdiv(b_ceil, tb_max), 2)
    return _round_up(pl.cdiv(b_ceil, n_steps), LANE)


def soft_q_forward(x, params, tb_max=TB_MAX):
    """x: (B, IN_DIM) float32 -> (B, 1) float32 Q-values."""
    w1, w2, p_small = params
    B = x.shape[0]
    tb = _choose_tile(B, tb_max)
    b_pad = _round_up(B, tb)
    grid = (b_pad // tb,)

    # Wrapper-side layout plumbing: bf16 cast, zero-pad batch & features, transpose so
    # the kernel sees a lane-dense (IN_PAD, b_pad) slab with batch on the lane axis.
    xp = jnp.pad(x.astype(jnp.bfloat16),
                 ((0, b_pad - B), (0, IN_PAD - IN_DIM)))
    xt = xp.T                                              # (IN_PAD, b_pad)

    cost = pl.CostEstimate(
        flops=2 * b_pad * (IN_PAD * HIDDEN + HIDDEN * HIDDEN + HIDDEN),
        transcendentals=0,
        bytes_accessed=(b_pad * IN_PAD * 2                     # x (bf16)
                        + (IN_PAD + HIDDEN) * HIDDEN * 2       # w1 + w2 (bf16)
                        + HIDDEN * 4 * 4                       # packed b1/b2/wq/bq (f32)
                        + b_pad * 4),                          # q output (f32)
    )

    qt = pl.pallas_call(
        soft_q_kernel,
        out_shape=jax.ShapeDtypeStruct((1, b_pad), jnp.float32),
        grid=grid,
        in_specs=[
            pl.BlockSpec((IN_PAD, tb), lambda i: (0, i)),      # xᵀ: tiled over batch lanes
            pl.BlockSpec((HIDDEN, IN_PAD), lambda i: (0, 0)),  # w1: VMEM-resident
            pl.BlockSpec((HIDDEN, HIDDEN), lambda i: (0, 0)),  # w2: VMEM-resident
            pl.BlockSpec((HIDDEN, 4), lambda i: (0, 0)),       # packed b1/b2/wq/bq
        ],
        out_specs=pl.BlockSpec((1, tb), lambda i: (0, i)),     # lane-dense (1, tb) row
        compiler_params=pltpu.CompilerParams(
            dimension_semantics=("parallel",),                 # shard tiles across TCs (v7x)
        ),
        cost_estimate=cost,
    )(xt, w1, w2, p_small)

    return qt[0, :B].reshape(B, 1)


def xavier_uniform(key, out_features, in_features, fan_in, fan_out):
    # Matches torch.nn.init.xavier_uniform_ semantics (gain=1); PyTorch (out, in) layout.
    bound = (6.0 / (fan_in + fan_out)) ** 0.5
    return jax.random.uniform(key, (out_features, in_features), jnp.float32,
                              -bound, bound)


def init_params(key):
    k1, k2, k3 = jax.random.split(key, 3)
    # fc1 weight (HIDDEN, IN_DIM) zero-padded along K to IN_PAD; streamed as bf16.
    w1 = xavier_uniform(k1, HIDDEN, IN_DIM, IN_DIM, HIDDEN)
    w1 = jnp.pad(w1, ((0, 0), (0, IN_PAD - IN_DIM))).astype(jnp.bfloat16)
    w2 = xavier_uniform(k2, HIDDEN, HIDDEN, HIDDEN, HIDDEN).astype(jnp.bfloat16)
    wq_col = xavier_uniform(k3, 1, HIDDEN, HIDDEN, 1)[0, :]           # (HIDDEN,) f32
    b1 = jnp.full((HIDDEN,), 0.1, jnp.float32)
    b2 = jnp.full((HIDDEN,), 0.1, jnp.float32)
    bq_col = jnp.zeros((HIDDEN,), jnp.float32).at[0].set(0.1)         # bq packed at [0, 3]
    p_small = jnp.stack([b1, b2, wq_col, bq_col], axis=1)             # (HIDDEN, 4) f32
    return (w1, w2, p_small)


def reference_forward(x, params):
    # Mirrors the kernel's dtype pipeline exactly (bf16 streaming, f32 accumulation).
    # NOTE: bf16 streaming is a deliberate numerics choice (~1e-2 rel. vs f32 PyTorch).
    w1, w2, p = params
    b1, b2, wq, bq = p[:, 0], p[:, 1], p[:, 2], p[0, 3]
    xb = jnp.pad(x, ((0, 0), (0, IN_PAD - IN_DIM))).astype(jnp.bfloat16)
    h1 = jnp.maximum(jnp.dot(xb, w1.T, preferred_element_type=jnp.float32) + b1, 0.0)
    h2 = jnp.maximum(
        jnp.dot(h1.astype(jnp.bfloat16), w2.T, preferred_element_type=jnp.float32) + b2,
        0.0)
    return jnp.sum(h2 * wq, axis=-1, keepdims=True) + bq


if __name__ == "__main__":
    key = jax.random.PRNGKey(0)
    k_obs, k_act, k_params, k_big = jax.random.split(key, 4)

    # Small-shape test matching the module: (obs=22) + (act=4) -> 26 features, batch=2.
    batch = 2
    obs = jax.random.normal(k_obs, (batch, OBS_DIM), jnp.float32)
    act = jax.random.normal(k_act, (batch, ACT_DIM), jnp.float32)
    x = jnp.concatenate([obs, act], axis=-1)          # (2, 26)

    params = init_params(k_params)

    q = jax.block_until_ready(soft_q_forward(x, params))
    q_ref = reference_forward(x, params)
    assert q.shape == (batch, 1)
    assert jnp.allclose(q, q_ref, atol=2e-4, rtol=2e-4), (q, q_ref)

    # Multi-tile check: several grid steps + a padded last batch tile (tb_max=512).
    x_big = jax.random.normal(k_big, (2500, IN_DIM), jnp.float32)
    q_big = jax.block_until_ready(soft_q_forward(x_big, params, tb_max=512))
    q_big_ref = reference_forward(x_big, params)
    assert q_big.shape == (2500, 1)
    assert jnp.allclose(q_big, q_big_ref, atol=2e-4, rtol=2e-4)

    # Default (large-tile) path on the big batch as well.
    q_big2 = jax.block_until_ready(soft_q_forward(x_big, params))
    assert jnp.allclose(q_big2, q_big_ref, atol=2e-4, rtol=2e-4)

    print("KERNEL_OK")
</pallas_src>

<mosaic_0001>
module attributes {stable_mosaic.version = 11 : i64} {
  func.func @soft_q_kernel(%arg0: i32, %arg1: memref<32x128xbf16, #tpu.memory_space<vmem>>, %arg2: memref<32x32xbf16, #tpu.memory_space<vmem>>, %arg3: memref<32x32xbf16, #tpu.memory_space<vmem>>, %arg4: memref<32x4xf32, #tpu.memory_space<vmem>>, %arg5: memref<1x128xf32, #tpu.memory_space<vmem>>) attributes {dimension_semantics = [#tpu.dimension_semantics<parallel>], iteration_bounds = array<i64: 1>, scalar_prefetch = 0 : i64, scratch_operands = 0 : i64, tpu.core_type = #tpu.core_type<tc>, window_params = [{transform_indices = @transform_0, window_bounds = array<i64: 32, 128>}, {pipeline_mode = #tpu.pipeline_mode<synchronous>, transform_indices = @transform_1, window_bounds = array<i64: 32, 32>}, {pipeline_mode = #tpu.pipeline_mode<synchronous>, transform_indices = @transform_2, window_bounds = array<i64: 32, 32>}, {pipeline_mode = #tpu.pipeline_mode<synchronous>, transform_indices = @transform_3, window_bounds = array<i64: 32, 4>}, {transform_indices = @transform_4, window_bounds = array<i64: 1, 128>}]} {
    %c0 = arith.constant 0 : index
    %c0_0 = arith.constant 0 : index
    %0 = vector.load %arg2[%c0, %c0_0] : memref<32x32xbf16, #tpu.memory_space<vmem>>, vector<32x32xbf16>
    %c0_1 = arith.constant 0 : index
    %c0_2 = arith.constant 0 : index
    %1 = vector.load %arg1[%c0_1, %c0_2] : memref<32x128xbf16, #tpu.memory_space<vmem>>, vector<32x128xbf16>
    %cst = arith.constant dense<0.000000e+00> : vector<32x128xf32>
    %2 = tpu.matmul %0, %1, %cst {dimension_numbers = #tpu.dot_dimension_numbers<[1], [0], [0], [1], [0, 0, 1, 1], [], []>} : vector<32x32xbf16>, vector<32x128xbf16>, vector<32x128xf32> -> vector<32x128xf32>
    %c0_3 = arith.constant 0 : index
    %c0_4 = arith.constant 0 : index
    %3 = vector.load %arg4[%c0_3, %c0_4] : memref<32x4xf32, #tpu.memory_space<vmem>>, vector<32x1xf32>
    %4 = vector.broadcast %3 : vector<32x1xf32> to vector<32x128xf32>
    %5 = arith.addf %2, %4 : vector<32x128xf32>
    %cst_5 = arith.constant 0.000000e+00 : f32
    %6 = vector.broadcast %cst_5 : f32 to vector<32x128xf32>
    %7 = arith.maximumf %5, %6 : vector<32x128xf32>
    %c0_6 = arith.constant 0 : index
    %c0_7 = arith.constant 0 : index
    %8 = vector.load %arg3[%c0_6, %c0_7] : memref<32x32xbf16, #tpu.memory_space<vmem>>, vector<32x32xbf16>
    %9 = arith.truncf %7 : vector<32x128xf32> to vector<32x128xbf16>
    %cst_8 = arith.constant dense<0.000000e+00> : vector<32x128xf32>
    %10 = tpu.matmul %8, %9, %cst_8 {dimension_numbers = #tpu.dot_dimension_numbers<[1], [0], [0], [1], [0, 0, 1, 1], [], []>} : vector<32x32xbf16>, vector<32x128xbf16>, vector<32x128xf32> -> vector<32x128xf32>
    %c0_9 = arith.constant 0 : index
    %c1 = arith.constant 1 : index
    %11 = vector.load %arg4[%c0_9, %c1] : memref<32x4xf32, #tpu.memory_space<vmem>>, vector<32x1xf32>
    %12 = vector.broadcast %11 : vector<32x1xf32> to vector<32x128xf32>
    %13 = arith.addf %10, %12 : vector<32x128xf32>
    %cst_10 = arith.constant 0.000000e+00 : f32
    %14 = vector.broadcast %cst_10 : f32 to vector<32x128xf32>
    %15 = arith.maximumf %13, %14 : vector<32x128xf32>
    %c0_11 = arith.constant 0 : index
    %c2 = arith.constant 2 : index
    %16 = vector.load %arg4[%c0_11, %c2] : memref<32x4xf32, #tpu.memory_space<vmem>>, vector<32x1xf32>
    %17 = vector.broadcast %16 : vector<32x1xf32> to vector<32x128xf32>
    %18 = arith.mulf %15, %17 : vector<32x128xf32>
    %cst_12 = arith.constant dense<0.000000e+00> : vector<128xf32>
    %19 = vector.multi_reduction <add>, %18, %cst_12 [0] : vector<32x128xf32> to vector<128xf32>
    %20 = vector.shape_cast %19 : vector<128xf32> to vector<1x128xf32>
    %c0_13 = arith.constant 0 : index
    %c3 = arith.constant 3 : index
    %21 = vector.load %arg4[%c0_13, %c3] : memref<32x4xf32, #tpu.memory_space<vmem>>, vector<1x1xf32>
    %22 = vector.broadcast %21 : vector<1x1xf32> to vector<1x128xf32>
    %23 = arith.addf %20, %22 : vector<1x128xf32>
    %c0_14 = arith.constant 0 : index
    %c0_15 = arith.constant 0 : index
    %24 = vector.load %arg5[%c0_14, %c0_15] : memref<1x128xf32, #tpu.memory_space<vmem>>, vector<1x128xf32>
    tpu.vector_store %arg5[%c0_14, %c0_15], %23 {strides = array<i32>} : memref<1x128xf32, #tpu.memory_space<vmem>>, vector<1x128xf32>,
    return
  }
  func.func @transform_0(%arg0: i32) -> (i32, i32) {
    %c0_i32 = arith.constant 0 : i32
    %c0_i32_0 = arith.constant 0 : i32
    return %c0_i32, %arg0 : i32, i32
  }
  func.func @transform_1(%arg0: i32) -> (i32, i32) {
    %c0_i32 = arith.constant 0 : i32
    %c0_i32_0 = arith.constant 0 : i32
    %c0_i32_1 = arith.constant 0 : i32
    return %c0_i32, %c0_i32_0 : i32, i32
  }
  func.func @transform_2(%arg0: i32) -> (i32, i32) {
    %c0_i32 = arith.constant 0 : i32
    %c0_i32_0 = arith.constant 0 : i32
    %c0_i32_1 = arith.constant 0 : i32
    return %c0_i32, %c0_i32_0 : i32, i32
  }
  func.func @transform_3(%arg0: i32) -> (i32, i32) {
    %c0_i32 = arith.constant 0 : i32
    %c0_i32_0 = arith.constant 0 : i32
    %c0_i32_1 = arith.constant 0 : i32
    return %c0_i32, %c0_i32_0 : i32, i32
  }
  func.func @transform_4(%arg0: i32) -> (i32, i32) {
    %c0_i32 = arith.constant 0 : i32
    %c0_i32_0 = arith.constant 0 : i32
    return %c0_i32, %arg0 : i32, i32
  }
}

</mosaic_0001>

<llo_original>
// kernel: tpu_custom_call.1
$region0: #{tpu_custom_call.1}
  #allocation0 [shape = 'u32[]', space=smem, size = 0x4, offset = 0x4, fixed_abs, tag = 'smem constant byte address 0x4 - core index']
  #allocation1 [shape = 'u32[144,128]{1,0:T(1,128)}', space=vmem, size = 0x12000, scoped, tag = 'internal scratch']
  %s0 = inlined_call_operand.vmem [shape: bf16[32,128], index: 0, kind: input, shape index: {}]
  %s1 = inlined_call_operand.vmem [shape: bf16[32,32], index: 1, kind: input, shape index: {}]
  %s2 = inlined_call_operand.hbm [shape: bf16[32,32], index: 2, kind: input, shape index: {}]
  %s3 = inlined_call_operand.vmem [shape: f32[32,4], index: 3, kind: input, shape index: {}]
  %s4 = inlined_call_operand.hbm [shape: f32[1,128], index: 4, kind: output, shape index: {}]
  %s5 = sld [smem:[#allocation0]]
  $region30: #{tpu_custom_call.1} parent=0
    _
  %s7 = ssub.s32 1, %s5
  %s8 = scalar_select 0, %s7, %s5
  $region1: #{tpu_custom_call.1} parent=0
    #allocation2 [shape = 'u8[8192]{0}', space=vmem, size = 0x2000, scoped, tag = 'input window, operand 2, single buffered']
    #allocation3 [shape = 's32[1]{0}', space=sflag, size = 0x4, scoped, tag = 'scoped memory for tpu_custom_call.1']
    #allocation4 [shape = 's32[1]{0}', space=sflag, size = 0x4, scoped, tag = 'scoped memory for tpu_custom_call.1']
    #allocation5 [shape = 'u8[512]{0}', space=vmem, size = 0x400, scoped, tag = 'output window, operand 0, single buffered']
    %9 = vsyncpa [#allocation3], 0
    %10 = vsyncpa [#allocation4], 0
    // Predicated region
    $region2: #{tpu_custom_call.1} parent=1 // pred_check
      _
    $region3: #{tpu_custom_call.1} parent=1 // pred_check_branch
      %12 = sbr.rel (0) target = $region5
    $region4: #{tpu_custom_call.1} parent=1 // pred_region
      _
    $region5: #{tpu_custom_call.1} parent=1 // pred_fallthru
      _
    // Predicated region
    $region6: #{tpu_custom_call.1} parent=1 // pred_check
      _
    $region7: #{tpu_custom_call.1} parent=1 // pred_check_branch
      %14 = sbr.rel (0) target = $region9
    $region8: #{tpu_custom_call.1} parent=1 // pred_region
      _
    $region9: #{tpu_custom_call.1} parent=1 // pred_fallthru
      _
    // Predicated region
    $region10: #{tpu_custom_call.1} parent=1 // pred_check
      _
    $region11: #{tpu_custom_call.1} parent=1 // pred_check_branch
      %16 = sbr.rel (0) target = $region13
    $region12: #{tpu_custom_call.1} parent=1 // pred_region
      %s18 = ssub.s32 256, 256
      %19 = vsyncadd [#allocation3], %s18
      %s20 = sshll.u32 [#allocation2], 4
      %s21 = int_to_ptr.vmem [resolvable:$true] %s20
      %26 = dma.hbm_to_vmem [thread:$0]  %s2, 256, %s21, [#allocation3], 64, 64, 4
    $region13: #{tpu_custom_call.1} parent=1 // pred_fallthru
      _
    // Predicated region
    $region14: #{tpu_custom_call.1} parent=1 // pred_check
      _
    $region15: #{tpu_custom_call.1} parent=1 // pred_check_branch
      %28 = sbr.rel (0) target = $region17
    $region16: #{tpu_custom_call.1} parent=1 // pred_region
      _
    $region17: #{tpu_custom_call.1} parent=1 // pred_fallthru
      _
    // Predicated region
    $region18: #{tpu_custom_call.1} parent=1 // pred_check
      _
    $region19: #{tpu_custom_call.1} parent=1 // pred_check_branch
      %30 = sbr.rel (0) target = $region21
    $region20: #{tpu_custom_call.1} parent=1 // pred_region
      %31 = dma.done [#allocation3], 256
    $region21: #{tpu_custom_call.1} parent=1 // pred_fallthru
      _
    %v33 = vld [vmem:[%s1] sm:$0xf]
    %v34 = vld [vmem:[%s1 + $0x4] sm:$0xf]
    %v35 = vld [vmem:[%s1 + $0x8] sm:$0xf]
    %v36 = vld [vmem:[%s1 + $0xc] sm:$0xf]
    %v37 = vld [vmem:[%s0] sm:$0xf]
    %v38 = vld [vmem:[%s0 + $0x4] sm:$0xf]
    %v39 = vld [vmem:[%s0 + $0x8] sm:$0xf]
    %v40 = vld [vmem:[%s0 + $0xc] sm:$0xf]
    %v41 = vld [vmem:[%s3] sm:$0xff]
    %v42 = vld [vmem:[%s3 + $0x8] sm:$0xff]
    %v43 = vld [vmem:[%s3 + $0x10] sm:$0xff]
    %v44 = vld [vmem:[%s3 + $0x18] sm:$0xff]
    %46 = vset.pattern.permute.xlu0 0
    %47 = vperm.xlu0 %46, %v41
    %v48 = vpop.permute.xlu0 %47
    %51 = vset.pattern.permute.xlu0 0
    %52 = vperm.xlu0 %51, %v42
    %v53 = vpop.permute.xlu0 %52
    %56 = vset.pattern.permute.xlu0 0
    %57 = vperm.xlu0 %56, %v43
    %v58 = vpop.permute.xlu0 %57
    %61 = vset.pattern.permute.xlu0 0
    %62 = vperm.xlu0 %61, %v44
    %v63 = vpop.permute.xlu0 %62
    %v69 = vunpack.c.l.b16 %v33
    %v70 = vunpack.c.l.b16 %v34
    %v71 = vunpack.c.l.b16 %v35
    %v72 = vunpack.c.l.b16 %v36
    %v73 = vpack.c.b16 %v70, %v69
    %v74 = vpack.c.b16 %v72, %v71
    %v79 = vunpack.c.l.b16 %v37
    %v80 = vunpack.c.l.b16 %v38
    %v81 = vunpack.c.l.b16 %v39
    %v82 = vunpack.c.l.b16 %v40
    %v83 = vpack.c.b16 %v80, %v79
    %v84 = vpack.c.b16 %v82, %v81
    %vm87 = vcmask 261120
    %v89 = vsel %vm87, %v73, 0
    %v92 = vsel %vm87, %v74, 0
    %94 = vmatprep.subr.bf16.mxu0 0
    %95 = vmatpush1.bf16.msra.mxu0 0
    %96 = vmatprep.subr.bf16.mxu0 0
    %97 = vmatpush1.bf16.msra.mxu0 0
    %98 = vmatprep.subr.bf16.mxu0 0
    %99 = vmatpush1.bf16.msra.mxu0 0
    %100 = vmatprep.subr.bf16.mxu0 0
    %101 = vmatpush1.bf16.msra.mxu0 0
    %102 = vmatprep.subr.bf16.mxu0 0
    %103 = vmatpush1.bf16.msra.mxu0 0
    %104 = vmatprep.subr.bf16.mxu0 0
    %105 = vmatpush1.bf16.msra.mxu0 0
    %106 = vmatprep.subr.bf16.mxu0 0
    %107 = vmatpush1.bf16.msra.mxu0 %v84
    %108 = vmatprep.subr.bf16.mxu0 0
    %109 = vmatpush1.bf16.msra.mxu0 %v83
    %110 = vmatprep.subr.bf16.mxu0 0
    %111 = vmatpush2.bf16.msra.mxu0 0
    %112 = vmatprep.subr.bf16.mxu0 0
    %113 = vmatpush2.bf16.msra.mxu0 0
    %114 = vmatprep.subr.bf16.mxu0 0
    %115 = vmatpush2.bf16.msra.mxu0 0
    %116 = vmatprep.subr.bf16.mxu0 0
    %117 = vmatpush2.bf16.msra.mxu0 0
    %118 = vmatprep.subr.bf16.mxu0 0
    %119 = vmatpush2.bf16.msra.mxu0 0
    %120 = vmatprep.subr.bf16.mxu0 0
    %121 = vmatpush2.bf16.msra.mxu0 0
    %122 = vmatprep.subr.bf16.mxu0 0
    %123 = vmatpush2.bf16.msra.mxu0 0
    %124 = vmatprep.subr.bf16.mxu0 0
    %125 = vmatpush2.bf16.msra.mxu0 0
    %126 = vmatprep.mubr.bf16.mxu0 0
    %127 = vmatmul.mubr.bf16.gmra.mxu0 %v89
    %v128 = vpop.f32.mrf.mxu0
    %v129 = vadd.f32 %v48, %v128
    %v130 = vpop.f32.mrf.mxu0
    %v131 = vpop.f32.mrf.mxu0
    %v132 = vadd.f32 %v53, %v131
    %v133 = vpop.f32.mrf.mxu0
    %134 = vmatprep.mubr.bf16.mxu0 0
    %135 = vmatmul.mubr.bf16.gmra.mxu0 %v92
    %v136 = vpop.f32.mrf.mxu0
    %v137 = vadd.f32 %v58, %v136
    %v138 = vpop.f32.mrf.mxu0
    %v139 = vpop.f32.mrf.mxu0
    %v140 = vadd.f32 %v63, %v139
    %v141 = vpop.f32.mrf.mxu0
    %142 = vdwg.mxu0
    %v143 = vmax.f32 %v129, 0.0
    %v144 = vmax.f32 %v132, 0.0
    %v145 = vmax.f32 %v137, 0.0
    %v146 = vmax.f32 %v140, 0.0
    %v147 = vld [vmem:[#allocation2] sm:$0xf]
    %v148 = vld [vmem:[#allocation2 + $0x4] sm:$0xf]
    %v149 = vld [vmem:[#allocation2 + $0x8] sm:$0xf]
    %v150 = vld [vmem:[#allocation2 + $0xc] sm:$0xf]
    %v151 = vpack.c.bf16 %v144, %v143
    %v152 = vpack.c.bf16 %v146, %v145
    %153 = vset.pattern.permute.xlu0 1
    %154 = vperm.xlu0 %153, %v41
    %v155 = vpop.permute.xlu0 %154
    %157 = vset.pattern.permute.xlu0 1
    %158 = vperm.xlu0 %157, %v42
    %v159 = vpop.permute.xlu0 %158
    %161 = vset.pattern.permute.xlu0 1
    %162 = vperm.xlu0 %161, %v43
    %v163 = vpop.permute.xlu0 %162
    %165 = vset.pattern.permute.xlu0 1
    %166 = vperm.xlu0 %165, %v44
    %v167 = vpop.permute.xlu0 %166
    %v173 = vunpack.c.l.b16 %v147
    %v174 = vunpack.c.l.b16 %v148
    %v175 = vunpack.c.l.b16 %v149
    %v176 = vunpack.c.l.b16 %v150
    %v177 = vpack.c.b16 %v174, %v173
    %v178 = vpack.c.b16 %v176, %v175
    %v180 = vsel %vm87, %v177, 0
    %v183 = vsel %vm87, %v178, 0
    %185 = vmatprep.subr.bf16.mxu0 0
    %186 = vmatpush1.bf16.msra.mxu0 0
    %187 = vmatprep.subr.bf16.mxu0 0
    %188 = vmatpush1.bf16.msra.mxu0 0
    %189 = vmatprep.subr.bf16.mxu0 0
    %190 = vmatpush1.bf16.msra.mxu0 0
    %191 = vmatprep.subr.bf16.mxu0 0
    %192 = vmatpush1.bf16.msra.mxu0 0
    %193 = vmatprep.subr.bf16.mxu0 0
    %194 = vmatpush1.bf16.msra.mxu0 0
    %195 = vmatprep.subr.bf16.mxu0 0
    %196 = vmatpush1.bf16.msra.mxu0 0
    %197 = vmatprep.subr.bf16.mxu0 0
    %198 = vmatpush1.bf16.msra.mxu0 %v152
    %199 = vmatprep.subr.bf16.mxu0 0
    %200 = vmatpush1.bf16.msra.mxu0 %v151
    %201 = vmatprep.subr.bf16.mxu0 0
    %202 = vmatpush2.bf16.msra.mxu0 0
    %203 = vmatprep.subr.bf16.mxu0 0
    %204 = vmatpush2.bf16.msra.mxu0 0
    %205 = vmatprep.subr.bf16.mxu0 0
    %206 = vmatpush2.bf16.msra.mxu0 0
    %207 = vmatprep.subr.bf16.mxu0 0
    %208 = vmatpush2.bf16.msra.mxu0 0
    %209 = vmatprep.subr.bf16.mxu0 0
    %210 = vmatpush2.bf16.msra.mxu0 0
    %211 = vmatprep.subr.bf16.mxu0 0
    %212 = vmatpush2.bf16.msra.mxu0 0
    %213 = vmatprep.subr.bf16.mxu0 0
    %214 = vmatpush2.bf16.msra.mxu0 0
    %215 = vmatprep.subr.bf16.mxu0 0
    %216 = vmatpush2.bf16.msra.mxu0 0
    %217 = vmatprep.mubr.bf16.mxu0 0
    %218 = vmatmul.mubr.bf16.gmra.mxu0 %v180
    %v219 = vpop.f32.mrf.mxu0
    %v220 = vadd.f32 %v155, %v219
    %v221 = vpop.f32.mrf.mxu0
    %v222 = vpop.f32.mrf.mxu0
    %v223 = vadd.f32 %v159, %v222
    %v224 = vpop.f32.mrf.mxu0
    %225 = vmatprep.mubr.bf16.mxu0 0
    %226 = vmatmul.mubr.bf16.gmra.mxu0 %v183
    %v227 = vpop.f32.mrf.mxu0
    %v228 = vadd.f32 %v163, %v227
    %v229 = vpop.f32.mrf.mxu0
    %v230 = vpop.f32.mrf.mxu0
    %v231 = vadd.f32 %v167, %v230
    %v232 = vpop.f32.mrf.mxu0
    %233 = vdwg.mxu0
    %v234 = vmax.f32 %v220, 0.0
    %v235 = vmax.f32 %v223, 0.0
    %v236 = vmax.f32 %v228, 0.0
    %v237 = vmax.f32 %v231, 0.0
    %238 = vset.pattern.permute.xlu0 2
    %239 = vperm.xlu0 %238, %v41
    %v240 = vpop.permute.xlu0 %239
    %242 = vset.pattern.permute.xlu0 2
    %243 = vperm.xlu0 %242, %v42
    %v244 = vpop.permute.xlu0 %243
    %246 = vset.pattern.permute.xlu0 2
    %247 = vperm.xlu0 %246, %v43
    %v248 = vpop.permute.xlu0 %247
    %250 = vset.pattern.permute.xlu0 2
    %251 = vperm.xlu0 %250, %v44
    %v252 = vpop.permute.xlu0 %251
    %v254 = vmul.f32 %v234, %v240
    %v255 = vmul.f32 %v235, %v244
    %v256 = vmul.f32 %v236, %v248
    %v257 = vmul.f32 %v237, %v252
    %v258 = vadd.f32 %v254, %v255
    %v259 = vadd.f32 %v258, %v256
    %v260 = vadd.f32 %v259, %v257
    %v261 = vrot.slane %v260, 4
    %v262 = vadd.f32 %v260, %v261
    %v263 = vrot.slane %v262, 2
    %v264 = vadd.f32 %v262, %v263
    %v265 = vrot.slane %v264, 1
    %v266 = vadd.f32 %v264, %v265
    %v267 = vld [vmem:[%s3] sm:$0x1]
    %269 = vset.pattern.permute.xlu0 3
    %270 = vperm.xlu0 %269, %v267
    %v271 = vpop.permute.xlu0 %270
    %v273 = vadd.f32 %v266, %v271
    %274 = vst [vmem:[#allocation5] sm:$0x1] %v273
    // Predicated region
    $region22: #{tpu_custom_call.1} parent=1 // pred_check
      _
    $region23: #{tpu_custom_call.1} parent=1 // pred_check_branch
      %276 = sbr.rel (0) target = $region25
    $region24: #{tpu_custom_call.1} parent=1 // pred_region
      %s278 = ssub.s32 16, 16
      %279 = vsyncadd [#allocation4], %s278
      %s281 = sshll.u32 [#allocation5], 4
      %s282 = int_to_ptr.vmem [resolvable:$true] %s281
      %284 = dma.vmem_to_hbm [thread:$0]  %s282, 16, %s4, [#allocation4]
    $region25: #{tpu_custom_call.1} parent=1 // pred_fallthru
      _
    // Predicated region
    $region26: #{tpu_custom_call.1} parent=1 // pred_check
      _
    $region27: #{tpu_custom_call.1} parent=1 // pred_check_branch
      %286 = sbr.rel (0) target = $region29
    $region28: #{tpu_custom_call.1} parent=1 // pred_region
      %287 = dma.done [#allocation4], 16
    $region29: #{tpu_custom_call.1} parent=1 // pred_fallthru
      _
    %288 = vsyncpa [#allocation3], 1
    %289 = vsyncpa [#allocation4], 1

</llo_original>
